<compile_context>
chip_gen: v7x
topology: tpu7x:2x2x1
jax: 0.10.0
libtpu: 0.0.40
codegen_flags: <defaults>
</compile_context>

<pallas_src>
import functools

import jax
import jax.numpy as jnp
from jax import lax
from jax.experimental import pallas as pl
from jax.experimental.pallas import tpu as pltpu


def _translate_kernel(params_ref, x_ref, o_ref):
    """params_ref: SMEM (2*B,) = [dx0, dy0, dx1, dy1, ...];
       x_ref / o_ref: VMEM (C, H, W) — one batch element, all channels."""
    b = pl.program_id(0)
    dx = params_ref[2 * b]
    dy = params_ref[2 * b + 1]

    C, H, W = x_ref.shape
    f32 = jnp.float32

    # Row-mixing weights Ry[i, h] = max(0, 1 - |(i - dy) - h|), built from thin
    # (H,1)/(1,H) vectors that broadcast (no O(H^2) coordinate math).
    i_out = lax.broadcasted_iota(jnp.int32, (H, 1), 0).astype(f32)
    h_src = lax.broadcasted_iota(jnp.int32, (1, H), 1).astype(f32)
    ry = jnp.maximum(0.0, 1.0 - jnp.abs((i_out - dy) - h_src))          # (H, H)

    # Column-mixing weights, built pre-transposed:
    #   RxT[w, j] = max(0, 1 - |(j - dx) - w|)
    w_src = lax.broadcasted_iota(jnp.int32, (W, 1), 0).astype(f32)
    j_out = lax.broadcasted_iota(jnp.int32, (1, W), 1).astype(f32)
    rxT = jnp.maximum(0.0, 1.0 - jnp.abs((j_out - dx) - w_src))         # (W, W)

    img = x_ref[...].astype(f32)                                        # (C, H, W)

    # Column pass for all channels at once: (C*H, W) @ (W, W) -> (C*H, W).
    # The reshape only merges leading dims over aligned (H, W) tiles — free.
    t = jnp.dot(img.reshape(C * H, W), rxT,
                preferred_element_type=f32).reshape(C, H, W)

    # Row pass as a batched matmul over channels: (C,H,H) @ (C,H,W) -> (C,H,W).
    ryb = jnp.broadcast_to(ry, (C, H, H))
    out = lax.dot_general(ryb, t, (((2,), (1,)), ((0,), (0,))),
                          preferred_element_type=f32)
    o_ref[...] = out.astype(o_ref.dtype)


@jax.jit
def translate_forward(x, translation):
    """x: (B, C, H, W); translation: (B, 2) = [dx, dy] per batch."""
    B, C, H, W = x.shape
    # Flat 1-D SMEM scalar table: [dx0, dy0, dx1, dy1, ...]
    params = translation.astype(jnp.float32).reshape(B * 2)

    return pl.pallas_call(
        _translate_kernel,
        out_shape=jax.ShapeDtypeStruct((B, C, H, W), x.dtype),
        grid=(B,),
        in_specs=[
            pl.BlockSpec(memory_space=pltpu.SMEM),                     # params (2B,)
            pl.BlockSpec((None, C, H, W), lambda b: (b, 0, 0, 0)),     # per-batch block
        ],
        out_specs=pl.BlockSpec((None, C, H, W), lambda b: (b, 0, 0, 0)),
        compiler_params=pltpu.CompilerParams(
            dimension_semantics=("parallel",)),
    )(params, x)


class Translate:
    """JAX/Pallas equivalent of kornia's Translate module
    (mode='bilinear', padding_mode='zeros')."""

    def __init__(self, translation, mode="bilinear", padding_mode="zeros",
                 align_corners=None):
        if mode != "bilinear" or padding_mode != "zeros":
            # TODO(synk): 'nearest' / 'border' / 'reflection' not implemented.
            raise NotImplementedError(
                "Only mode='bilinear' with padding_mode='zeros' is implemented.")
        self.translation = jnp.asarray(translation)
        self.align_corners = align_corners  # irrelevant for pure translation

    def __call__(self, x):
        unbatched = x.ndim == 3
        if unbatched:
            x = x[None]
        B = x.shape[0]
        t = jnp.broadcast_to(self.translation, (B, 2)).astype(jnp.float32)
        out = translate_forward(x, t)
        return out[0] if unbatched else out


if __name__ == "__main__":
    key = jax.random.PRNGKey(0)
    B, C, H, W = 2, 4, 16, 16
    x = jax.random.normal(key, (B, C, H, W), dtype=jnp.float32)

    # Deterministic "module parameters": batch 0 -> integer shift (+1 px in x),
    # batch 1 -> fractional / negative shift (dx=0.5, dy=-2).
    translation = jnp.array([[1.0, 0.0], [0.5, -2.0]], dtype=jnp.float32)

    module = Translate(translation)
    out = module(x)
    out = jax.block_until_ready(out)

    assert out.shape == x.shape and out.dtype == x.dtype

    # batch 0: integer +1 pixel shift in x -> exact column shift with zero fill.
    ref0 = jnp.concatenate([jnp.zeros((C, H, 1), x.dtype), x[0, :, :, :-1]], axis=-1)
    assert jnp.allclose(out[0], ref0, atol=1e-4), "integer-translation check failed"

    # batch 1: dx=0.5, dy=-2 -> out[i, j] = 0.5 * (x[i+2, j] + x[i+2, j-1]),
    # zeros padding outside the image.
    xb = x[1]
    up2 = jnp.concatenate([xb[:, 2:, :], jnp.zeros((C, 2, W), x.dtype)], axis=1)
    left = jnp.concatenate([jnp.zeros((C, H, 1), x.dtype), up2[:, :, :-1]], axis=2)
    ref1 = 0.5 * (up2 + left)
    assert jnp.allclose(out[1], ref1, atol=1e-4), "fractional-translation check failed"

    assert bool(jnp.all(jnp.isfinite(out)))
    print("KERNEL_OK")
</pallas_src>

<mosaic_0001>
module attributes {stable_mosaic.version = 11 : i64} {
  func.func @_translate_kernel(%arg0: i32, %arg1: memref<4xf32, #tpu.memory_space<smem>>, %arg2: memref<1x4x16x16xf32, #tpu.memory_space<vmem>>, %arg3: memref<1x4x16x16xf32, #tpu.memory_space<vmem>>) attributes {dimension_semantics = [#tpu.dimension_semantics<parallel>], iteration_bounds = array<i64: 2>, scalar_prefetch = 0 : i64, scratch_operands = 0 : i64, tpu.core_type = #tpu.core_type<tc>, window_params = [{transform_indices = @transform_0, window_bounds = array<i64: 4>}, {transform_indices = @transform_1, window_bounds = array<i64: 1, 4, 16, 16>}, {transform_indices = @transform_2, window_bounds = array<i64: 1, 4, 16, 16>}]} {
    %c2_i32 = arith.constant 2 : i32
    %0 = arith.muli %c2_i32, %arg0 : i32
    %1 = arith.index_cast %0 : i32 to index
    %2 = memref.load %arg1[%1] : memref<4xf32, #tpu.memory_space<smem>>
    %c2_i32_0 = arith.constant 2 : i32
    %3 = arith.muli %c2_i32_0, %arg0 : i32
    %c1_i32 = arith.constant 1 : i32
    %4 = arith.addi %3, %c1_i32 : i32
    %5 = arith.index_cast %4 : i32 to index
    %6 = memref.load %arg1[%5] : memref<4xf32, #tpu.memory_space<smem>>
    %7 = tpu.iota {dimensions = array<i32: 0>} : vector<16x1xi32>
    %8 = arith.sitofp %7 : vector<16x1xi32> to vector<16x1xf32>
    %9 = tpu.iota {dimensions = array<i32: 1>} : vector<1x16xi32>
    %10 = arith.sitofp %9 : vector<1x16xi32> to vector<1x16xf32>
    %11 = vector.broadcast %6 : f32 to vector<16x1xf32>
    %12 = arith.subf %8, %11 : vector<16x1xf32>
    %13 = vector.broadcast %12 : vector<16x1xf32> to vector<16x16xf32>
    %14 = vector.broadcast %10 : vector<1x16xf32> to vector<16x16xf32>
    %15 = arith.subf %13, %14 : vector<16x16xf32>
    %16 = math.absf %15 : vector<16x16xf32>
    %cst = arith.constant 1.000000e+00 : f32
    %17 = vector.broadcast %cst : f32 to vector<16x16xf32>
    %18 = arith.subf %17, %16 : vector<16x16xf32>
    %cst_1 = arith.constant 0.000000e+00 : f32
    %19 = vector.broadcast %cst_1 : f32 to vector<16x16xf32>
    %20 = arith.maximumf %19, %18 : vector<16x16xf32>
    %21 = tpu.iota {dimensions = array<i32: 0>} : vector<16x1xi32>
    %22 = arith.sitofp %21 : vector<16x1xi32> to vector<16x1xf32>
    %23 = tpu.iota {dimensions = array<i32: 1>} : vector<1x16xi32>
    %24 = arith.sitofp %23 : vector<1x16xi32> to vector<1x16xf32>
    %25 = vector.broadcast %2 : f32 to vector<1x16xf32>
    %26 = arith.subf %24, %25 : vector<1x16xf32>
    %27 = vector.broadcast %26 : vector<1x16xf32> to vector<16x16xf32>
    %28 = vector.broadcast %22 : vector<16x1xf32> to vector<16x16xf32>
    %29 = arith.subf %27, %28 : vector<16x16xf32>
    %30 = math.absf %29 : vector<16x16xf32>
    %cst_2 = arith.constant 1.000000e+00 : f32
    %31 = vector.broadcast %cst_2 : f32 to vector<16x16xf32>
    %32 = arith.subf %31, %30 : vector<16x16xf32>
    %cst_3 = arith.constant 0.000000e+00 : f32
    %33 = vector.broadcast %cst_3 : f32 to vector<16x16xf32>
    %34 = arith.maximumf %33, %32 : vector<16x16xf32>
    %c0 = arith.constant 0 : index
    %c0_4 = arith.constant 0 : index
    %c0_5 = arith.constant 0 : index
    %c0_6 = arith.constant 0 : index
    %35 = vector.load %arg2[%c0, %c0_4, %c0_5, %c0_6] : memref<1x4x16x16xf32, #tpu.memory_space<vmem>>, vector<1x4x16x16xf32>
    %36 = vector.shape_cast %35 : vector<1x4x16x16xf32> to vector<4x16x16xf32>
    %37 = vector.shape_cast %36 : vector<4x16x16xf32> to vector<64x16xf32>
    %cst_7 = arith.constant dense<0.000000e+00> : vector<64x16xf32>
    %38 = tpu.matmul %37, %34, %cst_7 {dimension_numbers = #tpu.dot_dimension_numbers<[1], [0], [0], [1], [0, 0, 1, 1], [], []>} : vector<64x16xf32>, vector<16x16xf32>, vector<64x16xf32> -> vector<64x16xf32>
    %39 = vector.shape_cast %38 : vector<64x16xf32> to vector<4x16x16xf32>
    %40 = vector.shape_cast %20 : vector<16x16xf32> to vector<1x16x16xf32>
    %41 = vector.broadcast %40 : vector<1x16x16xf32> to vector<4x16x16xf32>
    %cst_8 = arith.constant dense<0.000000e+00> : vector<4x16x16xf32>
    %42 = tpu.matmul %41, %39, %cst_8 {dimension_numbers = #tpu.dot_dimension_numbers<[2], [1], [1], [2], [0, 0, 0, 1, 1, 2], [0], [0]>} : vector<4x16x16xf32>, vector<4x16x16xf32>, vector<4x16x16xf32> -> vector<4x16x16xf32>
    %c0_9 = arith.constant 0 : index
    %c0_10 = arith.constant 0 : index
    %c0_11 = arith.constant 0 : index
    %c0_12 = arith.constant 0 : index
    %43 = vector.load %arg3[%c0_9, %c0_10, %c0_11, %c0_12] : memref<1x4x16x16xf32, #tpu.memory_space<vmem>>, vector<1x4x16x16xf32>
    %44 = vector.shape_cast %43 : vector<1x4x16x16xf32> to vector<4x16x16xf32>
    %45 = vector.shape_cast %42 : vector<4x16x16xf32> to vector<1x4x16x16xf32>
    tpu.vector_store %arg3[%c0_9, %c0_10, %c0_11, %c0_12], %45 {strides = array<i32>} : memref<1x4x16x16xf32, #tpu.memory_space<vmem>>, vector<1x4x16x16xf32>,
    return
  }
  func.func @transform_0(%arg0: i32) -> i32 {
    %c0_i32 = arith.constant 0 : i32
    %c0_i32_0 = arith.constant 0 : i32
    return %c0_i32 : i32
  }
  func.func @transform_1(%arg0: i32) -> (i32, i32, i32, i32) {
    %c0_i32 = arith.constant 0 : i32
    %c0_i32_0 = arith.constant 0 : i32
    %c0_i32_1 = arith.constant 0 : i32
    %c0_i32_2 = arith.constant 0 : i32
    return %arg0, %c0_i32, %c0_i32_0, %c0_i32_1 : i32, i32, i32, i32
  }
  func.func @transform_2(%arg0: i32) -> (i32, i32, i32, i32) {
    %c0_i32 = arith.constant 0 : i32
    %c0_i32_0 = arith.constant 0 : i32
    %c0_i32_1 = arith.constant 0 : i32
    %c0_i32_2 = arith.constant 0 : i32
    return %arg0, %c0_i32, %c0_i32_0, %c0_i32_1 : i32, i32, i32, i32
  }
}

</mosaic_0001>

<llo_original>
// kernel: translate_forward.1
$region0: #{translate_forward.1}
  #allocation0 [shape = 'u32[]', space=smem, size = 0x4, offset = 0x4, fixed_abs, tag = 'smem constant byte address 0x4 - core index']
  #allocation1 [shape = 'u32[144,128]{1,0:T(1,128)}', space=vmem, size = 0x12000, scoped, tag = 'internal scratch']
  %s0 = inlined_call_operand.vmem [shape: f32[4], index: 0, kind: input, shape index: {}]
  %s1 = inlined_call_operand.hbm [shape: f32[2,4,16,16], index: 1, kind: input, shape index: {}]
  %s2 = inlined_call_operand.hbm [shape: f32[2,4,16,16], index: 2, kind: output, shape index: {}]
  %s3 = sld [smem:[#allocation0]]
  $region49: #{translate_forward.1} parent=0
    _
  %s5 = ssub.s32 1, %s3
  %s6 = scalar_select 0, %s5, %s3
  $region1: #{translate_forward.1} parent=0
    #allocation2 [shape = 'u8[512]{0}', space=smem, size = 0x200, scoped, tag = 'input window, operand 0, single buffered']
    #allocation3 [shape = 's32[2]{0}', space=sflag, size = 0x8, scoped, tag = 'scoped memory for translate_forward.1']
    #allocation4 [shape = 's32[2]{0}', space=sflag, size = 0x8, scoped, tag = 'scoped memory for translate_forward.1']
    #allocation5 [shape = 's32[2]{0}', space=sflag, size = 0x8, scoped, tag = 'scoped memory for translate_forward.1']
    #allocation6 [shape = 'u8[65536]{0}', space=vmem, size = 0x10000, scoped, tag = 'input window, operand 1']
    #allocation7 [shape = 'u8[65536]{0}', space=vmem, size = 0x10000, scoped, tag = 'output window, operand 0']
    %7 = vsyncpa [#allocation5], 0
    %8 = vsyncpa [#allocation3], 0
    %s9 = scalar_lea.sflag [#allocation3], 1
    %10 = vsyncpa %s9, 0
    %11 = vsyncpa [#allocation4], 0
    %s12 = scalar_lea.sflag [#allocation4], 1
    %13 = vsyncpa %s12, 0
    loop: start=0, step=1, limit=4
    $region2: #{translate_forward.1} parent=1 // loop_pre_header
      _
    $region3: #{translate_forward.1} parent=1 // loop_header
      %s15 = sphi 0, %s19
      %p16 = scmp.ge.s32.totalorder %s15, 4
      %s23 = sphi 0, %s23
      %s25 = sphi 0, %s23
      %s26 = sphi 0, %s25
      %s40 = sphi 0, %s26
      %s46 = sphi 0, %s48
      %s49 = sphi 0, %s46
      %s50 = sphi 0, %s49
      %s66 = sphi 0, %s50
      %s72 = sphi 0, %s74
      %s75 = sphi 0, %s72
      %s76 = sphi 0, %s75
      %s92 = sphi 0, %s76
    $region4: #{translate_forward.1} parent=1 // loop_header_branch
      %18 = sbr.rel (%p16) target = $region8
    $region5: #{translate_forward.1} parent=1 // loop_body
      %s20 = ssub.s32 %s15, 1
      %s21 = ssub.s32 %s15, 2
      %s22 = sadd.s32 %s15, 1
      %s24 = sadd.s32 %s23, 1
      %p27 = scmp.eq.s32.totalorder %s15, 1
      %p28 = scmp.ne.s32.totalorder %s23, %s25
      %p29 = scmp.eq.s32.totalorder %s15, 0
      %p30 = por %p28, %p29
      %p31 = scmp.ne.s32.totalorder %s23, %s25
      %p32 = scmp.eq.s32.totalorder %s20, 1
      %p33 = por %p31, %p32
      %p34 = scmp.ne.s32.totalorder %s25, %s26
      %p35 = scmp.eq.s32.totalorder %s20, 0
      %p36 = por %p34, %p35
      %p37 = scmp.ne.s32.totalorder %s25, %s26
      %p38 = scmp.eq.s32.totalorder %s21, 1
      %p39 = por %p37, %p38
      %p41 = scmp.ne.s32.totalorder %s26, %s40
      %p42 = scmp.eq.s32.totalorder %s21, 0
      %p43 = por %p41, %p42
      %s44 = ssub.s32 %s15, %s22
      %p45 = scmp.eq.s32.totalorder %s44, 0
      %s47 = sadd.s32 %s46, 1
      %s48 = scalar_select %p45, %s46, %s47
      %p51 = pneg %p45
      %p52 = scmp.eq.s32.totalorder %s15, 1
      %p53 = por %p51, %p52
      %p54 = scmp.ne.s32.totalorder %s46, %s49
      %p55 = scmp.eq.s32.totalorder %s15, 0
      %p56 = por %p54, %p55
      %p57 = scmp.ne.s32.totalorder %s46, %s49
      %p58 = scmp.eq.s32.totalorder %s20, 1
      %p59 = por %p57, %p58
      %p60 = scmp.ne.s32.totalorder %s49, %s50
      %p61 = scmp.eq.s32.totalorder %s20, 0
      %p62 = por %p60, %p61
      %p63 = scmp.ne.s32.totalorder %s49, %s50
      %p64 = scmp.eq.s32.totalorder %s21, 1
      %p65 = por %p63, %p64
      %p67 = scmp.ne.s32.totalorder %s50, %s66
      %p68 = scmp.eq.s32.totalorder %s21, 0
      %p69 = por %p67, %p68
      %s70 = ssub.s32 %s15, %s22
      %p71 = scmp.eq.s32.totalorder %s70, 0
      %s73 = sadd.s32 %s72, 1
      %s74 = scalar_select %p71, %s72, %s73
      %p77 = pneg %p71
      %p78 = scmp.eq.s32.totalorder %s15, 1
      %p79 = por %p77, %p78
      %p80 = scmp.ne.s32.totalorder %s72, %s75
      %p81 = scmp.eq.s32.totalorder %s15, 0
      %p82 = por %p80, %p81
      %p83 = scmp.ne.s32.totalorder %s72, %s75
      %p84 = scmp.eq.s32.totalorder %s20, 1
      %p85 = por %p83, %p84
      %p86 = scmp.ne.s32.totalorder %s75, %s76
      %p87 = scmp.eq.s32.totalorder %s20, 0
      %p88 = por %p86, %p87
      %p89 = scmp.ne.s32.totalorder %s75, %s76
      %p90 = scmp.eq.s32.totalorder %s21, 1
      %p91 = por %p89, %p90
      %p93 = scmp.ne.s32.totalorder %s76, %s92
      %p94 = scmp.eq.s32.totalorder %s21, 0
      %p95 = por %p93, %p94
      %p96 = scmp.le.s32.totalorder 1, %s15
      %p97 = scmp.lt.s32.totalorder %s15, 3
      %p98 = pnand %p96, %p97
      %p99 = pneg %p98
      // Predicated region
      $region9: #{translate_forward.1} parent=5 // pred_check
        _
      $region10: #{translate_forward.1} parent=5 // pred_check_branch
        %101 = sbr.rel (%p98) target = $region12
      $region11: #{translate_forward.1} parent=5 // pred_region
        %s102 = ssub.s32 %s15, 1
        // Predicated region
        $region13: #{translate_forward.1} parent=11 // pred_check
          %p103 = pneg %p36
        $region14: #{translate_forward.1} parent=11 // pred_check_branch
          %105 = sbr.rel (%p103) target = $region16
        $region15: #{translate_forward.1} parent=11 // pred_region
          %s107 = ssub.s32 16, 16
          %108 = vsyncadd [#allocation5], %s107
          %s110 = sshll.u32 %s0, 4
          %s111 = int_to_ptr.vmem [resolvable:$true] %s110
          %113 = dma.vmem_to_smem %s111, 16, [#allocation2], [#allocation5]
        $region16: #{translate_forward.1} parent=11 // pred_fallthru
          _
      $region12: #{translate_forward.1} parent=5 // pred_fallthru
        _
      %p114 = scmp.lt.s32.totalorder %s15, 2
      // Predicated region
      $region17: #{translate_forward.1} parent=5 // pred_check
        %p115 = pneg %p114
      $region18: #{translate_forward.1} parent=5 // pred_check_branch
        %117 = sbr.rel (%p115) target = $region20
      $region19: #{translate_forward.1} parent=5 // pred_region
        // Predicated region
        $region21: #{translate_forward.1} parent=19 // pred_check
          %p118 = pneg %p56
        $region22: #{translate_forward.1} parent=19 // pred_check_branch
          %120 = sbr.rel (%p118) target = $region24
        $region23: #{translate_forward.1} parent=19 // pred_region
          %s121 = sand.u32 %s46, 1
          %s122 = scalar_lea.sflag [#allocation3], %s121
          %s123 = sand.u32 %s46, 1
          %s124 = smul.addr %s123, 64
          %s125 = scalar_lea.vmem [#allocation6], %s124
          %s127 = ssub.s32 1024, 1024
          %128 = vsyncadd %s122, %s127
          %s129 = smul.addr %s15, 8
          %s130 = smul.addr %s129, 128
          %s131 = scalar_lea.hbm %s1, %s130
          %s132 = sshll.u32 %s125, 4
          %s133 = int_to_ptr.vmem [resolvable:$true] %s132
          %138 = dma.hbm_to_vmem [thread:$0]  %s131, 1024, %s133, %s122, 128, 128, 8
        $region24: #{translate_forward.1} parent=19 // pred_fallthru
          _
      $region20: #{translate_forward.1} parent=5 // pred_fallthru
        _
      %p139 = scmp.le.s32.totalorder 1, %s15
      %p140 = scmp.lt.s32.totalorder %s15, 3
      %p141 = pnand %p139, %p140
      %p142 = pneg %p141
      // Predicated region
      $region25: #{translate_forward.1} parent=5 // pred_check
        _
      $region26: #{translate_forward.1} parent=5 // pred_check_branch
        %144 = sbr.rel (%p141) target = $region28
      $region27: #{translate_forward.1} parent=5 // pred_region
        %s145 = ssub.s32 %s15, 1
        // Predicated region
        $region29: #{translate_forward.1} parent=27 // pred_check
          %p146 = pneg %p36
        $region30: #{translate_forward.1} parent=27 // pred_check_branch
          %148 = sbr.rel (%p146) target = $region32
        $region31: #{translate_forward.1} parent=27 // pred_region
          %149 = dma.done [#allocation5], 16
        $region32: #{translate_forward.1} parent=27 // pred_fallthru
          _
        %s150 = sand.u32 %s49, 1
        %s151 = scalar_lea.sflag [#allocation3], %s150
        %s152 = sand.u32 %s49, 1
        %s153 = smul.addr %s152, 64
        %s154 = scalar_lea.vmem [#allocation6], %s153
        // Predicated region
        $region33: #{translate_forward.1} parent=27 // pred_check
          %p155 = pneg %p62
        $region34: #{translate_forward.1} parent=27 // pred_check_branch
          %157 = sbr.rel (%p155) target = $region36
        $region35: #{translate_forward.1} parent=27 // pred_region
          %158 = dma.done %s151, 1024
        $region36: #{translate_forward.1} parent=27 // pred_fallthru
          _
        %159 = sfence
        %p160 = pneg %p36
        %p161 = pneg %p33
        %s162 = sand.u32 %s49, 1
        %s163 = scalar_lea.sflag [#allocation3], %s162
        %s164 = sand.u32 %s49, 1
        %s165 = smul.addr %s164, 64
        %s166 = scalar_lea.vmem [#allocation6], %s165
        %p167 = pneg %p62
        %p168 = pneg %p59
        %p169 = pneg %p88
        %p170 = pneg %p85
        %s171 = sand.u32 %s75, 1
        %s172 = scalar_lea.sflag [#allocation4], %s171
        %s173 = sand.u32 %s75, 1
        %s174 = smul.addr %s173, 64
        %s175 = scalar_lea.vmem [#allocation7], %s174
        %s176 = smul.u32 %s20, 2
        %s177 = sld [smem:[#allocation2 + %s176]]
        %s178 = sadd.s32 %s176, 1
        %s179 = sld [smem:[#allocation2 + %s178]]
        %v180 = vlaneseq
        %v181 = vshrl.u32 %v180, 7
        %v182 = vadd.s32 %v181, 8
        %v183 = vcvt.s32.f32 %v181
        %v184 = vcvt.s32.f32 %v182
        %v185 = vlaneseq
        %v186 = vand.u32 %v185, 127
        %v187 = vcvt.s32.f32 %v186
        %v188 = vstv %s179
        %v189 = vsub.f32 %v183, %v188
        %v190 = vsub.f32 %v184, %v188
        %v191 = vsub.f32 %v189, %v187
        %v192 = vsub.f32 %v190, %v187
        %v193 = vand.u32 2147483647, %v191
        %v194 = vand.u32 2147483647, %v192
        %v195 = vsub.f32 1.0, %v193
        %v196 = vsub.f32 1.0, %v194
        %v197 = vmax.f32 %v195, 0.0
        %v198 = vmax.f32 %v196, 0.0
        %v199 = vstv %s177
        %v200 = vsub.f32 %v187, %v199
        %v201 = vsub.f32 %v200, %v183
        %v202 = vsub.f32 %v200, %v184
        %v203 = vand.u32 2147483647, %v201
        %v204 = vand.u32 2147483647, %v202
        %v205 = vsub.f32 1.0, %v203
        %v206 = vsub.f32 1.0, %v204
        %v207 = vmax.f32 %v205, 0.0
        %v208 = vmax.f32 %v206, 0.0
        %v209 = vld [vmem:[%s154] sm:$0xff]
        %v210 = vld [vmem:[%s154 + $0x8] sm:$0xff]
        %v211 = vld [vmem:[%s154 + $0x10] sm:$0xff]
        %v212 = vld [vmem:[%s154 + $0x18] sm:$0xff]
        %v213 = vld [vmem:[%s154 + $0x20] sm:$0xff]
        %v214 = vld [vmem:[%s154 + $0x28] sm:$0xff]
        %v215 = vld [vmem:[%s154 + $0x30] sm:$0xff]
        %v216 = vld [vmem:[%s154 + $0x38] sm:$0xff]
        %vm217 = vcmask 130048
        %v219 = vsel %vm217, %v209, 0
        %v222 = vsel %vm217, %v210, 0
        %v225 = vsel %vm217, %v211, 0
        %v228 = vsel %vm217, %v212, 0
        %v231 = vsel %vm217, %v213, 0
        %v234 = vsel %vm217, %v214, 0
        %v237 = vsel %vm217, %v215, 0
        %v240 = vsel %vm217, %v216, 0
        %242 = vmatprep.subr.mxu0 0.0
        %243 = vmatpush1.msra.mxu0 %v207
        %244 = vmatprep.subr.mxu0 0.0
        %245 = vmatpush1.msra.mxu0 %v208
        %246 = vmatprep.subr.mxu0 0.0
        %247 = vmatpush1.msra.mxu0 0.0
        %248 = vmatprep.subr.mxu0 0.0
        %249 = vmatpush1.msra.mxu0 0.0
        %250 = vmatprep.subr.mxu0 0.0
        %251 = vmatpush1.msra.mxu0 0.0
        %252 = vmatprep.subr.mxu0 0.0
        %253 = vmatpush1.msra.mxu0 0.0
        %254 = vmatprep.subr.mxu0 0.0
        %255 = vmatpush1.msra.mxu0 0.0
        %256 = vmatprep.subr.mxu0 0.0
        %257 = vmatpush1.msra.mxu0 0.0
        %258 = vmatprep.subr.mxu0 0.0
        %259 = vmatpush1.msra.mxu0 0.0
        %260 = vmatprep.subr.mxu0 0.0
        %261 = vmatpush1.msra.mxu0 0.0
        %262 = vmatprep.subr.mxu0 0.0
        %263 = vmatpush1.msra.mxu0 0.0
        %264 = vmatprep.subr.mxu0 0.0
        %265 = vmatpush1.msra.mxu0 0.0
        %266 = vmatprep.subr.mxu0 0.0
        %267 = vmatpush1.msra.mxu0 0.0
        %268 = vmatprep.subr.mxu0 0.0
        %269 = vmatpush1.msra.mxu0 0.0
        %270 = vmatprep.subr.mxu0 0.0
        %271 = vmatpush1.msra.mxu0 0.0
        %272 = vmatprep.subr.mxu0 0.0
        %273 = vmatpush1.msra.mxu0 0.0
        %274 = vmatprep.subr.mxu0 0.0
        %275 = vmatpush1.msra.mxu0 0.0
        %276 = vmatprep.subr.mxu0 0.0
        %277 = vmatpush1.msra.mxu0 0.0
        %278 = vmatprep.subr.mxu0 0.0
        %279 = vmatpush1.msra.mxu0 0.0
        %280 = vmatprep.subr.mxu0 0.0
        %281 = vmatpush1.msra.mxu0 0.0
        %282 = vmatprep.subr.mxu0 0.0
        %283 = vmatpush1.msra.mxu0 0.0
        %284 = vmatprep.subr.mxu0 0.0
        %285 = vmatpush1.msra.mxu0 0.0
        %286 = vmatprep.subr.mxu0 0.0
        %287 = vmatpush1.msra.mxu0 0.0
        %288 = vmatprep.subr.mxu0 0.0
        %289 = vmatpush1.msra.mxu0 0.0
        %290 = vmatprep.subr.mxu0 0.0
        %291 = vmatpush1.msra.mxu0 0.0
        %292 = vmatprep.subr.mxu0 0.0
        %293 = vmatpush1.msra.mxu0 0.0
        %294 = vmatprep.subr.mxu0 0.0
        %295 = vmatpush1.msra.mxu0 0.0
        %296 = vmatprep.subr.mxu0 0.0
        %297 = vmatpush1.msra.mxu0 0.0
        %298 = vmatprep.subr.mxu0 0.0
        %299 = vmatpush1.msra.mxu0 0.0
        %300 = vmatprep.subr.mxu0 0.0
        %301 = vmatpush1.msra.mxu0 0.0
        %302 = vmatprep.subr.mxu0 0.0
        %303 = vmatpush1.msra.mxu0 0.0
        %304 = vmatprep.subr.mxu0 0.0
        %305 = vmatpush1.msra.mxu0 0.0
        %306 = vmatprep.mubr.f32.mxu0 0.0
        %307 = vmatmul.mubr.f32.gmra.mrb[0].mxu0 %v219
        %v308 = vpop.f32.mrb[0].mxu0
        %v309 = vadd.f32 0.0, %v308
        %v310 = vpop.f32.mrb[0].mxu0
        %311 = vmatprep.mubr.f32.mxu0 0.0
        %312 = vmatmul.mubr.f32.gmra.mrb[0].mxu0 %v222
        %v313 = vpop.f32.mrb[0].mxu0
        %v314 = vadd.f32 0.0, %v313
        %v315 = vpop.f32.mrb[0].mxu0
        %316 = vmatprep.mubr.f32.mxu0 0.0
        %317 = vmatmul.mubr.f32.gmra.mrb[0].mxu0 %v225
        %v318 = vpop.f32.mrb[0].mxu0
        %v319 = vadd.f32 0.0, %v318
        %v320 = vpop.f32.mrb[0].mxu0
        %321 = vmatprep.mubr.f32.mxu0 0.0
        %322 = vmatmul.mubr.f32.gmra.mrb[0].mxu0 %v228
        %v323 = vpop.f32.mrb[0].mxu0
        %v324 = vadd.f32 0.0, %v323
        %v325 = vpop.f32.mrb[0].mxu0
        %326 = vmatprep.mubr.f32.mxu0 0.0
        %327 = vmatmul.mubr.f32.gmra.mrb[0].mxu0 %v231
        %v328 = vpop.f32.mrb[0].mxu0
        %v329 = vadd.f32 0.0, %v328
        %v330 = vpop.f32.mrb[0].mxu0
        %331 = vmatprep.mubr.f32.mxu0 0.0
        %332 = vmatmul.mubr.f32.gmra.mrb[0].mxu0 %v234
        %v333 = vpop.f32.mrb[0].mxu0
        %v334 = vadd.f32 0.0, %v333
        %v335 = vpop.f32.mrb[0].mxu0
        %336 = vmatprep.mubr.f32.mxu0 0.0
        %337 = vmatmul.mubr.f32.gmra.mrb[0].mxu0 %v237
        %v338 = vpop.f32.mrb[0].mxu0
        %v339 = vadd.f32 0.0, %v338
        %v340 = vpop.f32.mrb[0].mxu0
        %341 = vmatprep.mubr.f32.mxu0 0.0
        %342 = vmatmul.mubr.f32.gmra.mrb[0].mxu0 %v240
        %v343 = vpop.f32.mrb[0].mxu0
        %v344 = vadd.f32 0.0, %v343
        %v345 = vpop.f32.mrb[0].mxu0
        %346 = vdwg.mxu0
        %v348 = vsel %vm217, %v197, 0
        %v351 = vsel %vm217, %v198, 0
        %353 = vmatprep.subr.mxu0 0.0
        %354 = vmatpush1.msra.mxu0 %v309
        %355 = vmatprep.subr.mxu0 0.0
        %356 = vmatpush1.msra.mxu0 %v314
        %357 = vmatprep.subr.mxu0 0.0
        %358 = vmatpush1.msra.mxu0 0.0
        %359 = vmatprep.subr.mxu0 0.0
        %360 = vmatpush1.msra.mxu0 0.0
        %361 = vmatprep.subr.mxu0 0.0
        %362 = vmatpush1.msra.mxu0 0.0
        %363 = vmatprep.subr.mxu0 0.0
        %364 = vmatpush1.msra.mxu0 0.0
        %365 = vmatprep.subr.mxu0 0.0
        %366 = vmatpush1.msra.mxu0 0.0
        %367 = vmatprep.subr.mxu0 0.0
        %368 = vmatpush1.msra.mxu0 0.0
        %369 = vmatprep.subr.mxu0 0.0
        %370 = vmatpush1.msra.mxu0 0.0
        %371 = vmatprep.subr.mxu0 0.0
        %372 = vmatpush1.msra.mxu0 0.0
        %373 = vmatprep.subr.mxu0 0.0
        %374 = vmatpush1.msra.mxu0 0.0
        %375 = vmatprep.subr.mxu0 0.0
        %376 = vmatpush1.msra.mxu0 0.0
        %377 = vmatprep.subr.mxu0 0.0
        %378 = vmatpush1.msra.mxu0 0.0
        %379 = vmatprep.subr.mxu0 0.0
        %380 = vmatpush1.msra.mxu0 0.0
        %381 = vmatprep.subr.mxu0 0.0
        %382 = vmatpush1.msra.mxu0 0.0
        %383 = vmatprep.subr.mxu0 0.0
        %384 = vmatpush1.msra.mxu0 0.0
        %385 = vmatprep.subr.mxu0 0.0
        %386 = vmatpush1.msra.mxu0 0.0
        %387 = vmatprep.subr.mxu0 0.0
        %388 = vmatpush1.msra.mxu0 0.0
        %389 = vmatprep.subr.mxu0 0.0
        %390 = vmatpush1.msra.mxu0 0.0
        %391 = vmatprep.subr.mxu0 0.0
        %392 = vmatpush1.msra.mxu0 0.0
        %393 = vmatprep.subr.mxu0 0.0
        %394 = vmatpush1.msra.mxu0 0.0
        %395 = vmatprep.subr.mxu0 0.0
        %396 = vmatpush1.msra.mxu0 0.0
        %397 = vmatprep.subr.mxu0 0.0
        %398 = vmatpush1.msra.mxu0 0.0
        %399 = vmatprep.subr.mxu0 0.0
        %400 = vmatpush1.msra.mxu0 0.0
        %401 = vmatprep.subr.mxu0 0.0
        %402 = vmatpush1.msra.mxu0 0.0
        %403 = vmatprep.subr.mxu0 0.0
        %404 = vmatpush1.msra.mxu0 0.0
        %405 = vmatprep.subr.mxu0 0.0
        %406 = vmatpush1.msra.mxu0 0.0
        %407 = vmatprep.subr.mxu0 0.0
        %408 = vmatpush1.msra.mxu0 0.0
        %409 = vmatprep.subr.mxu0 0.0
        %410 = vmatpush1.msra.mxu0 0.0
        %411 = vmatprep.subr.mxu0 0.0
        %412 = vmatpush1.msra.mxu0 0.0
        %413 = vmatprep.subr.mxu0 0.0
        %414 = vmatpush1.msra.mxu0 0.0
        %415 = vmatprep.subr.mxu0 0.0
        %416 = vmatpush1.msra.mxu0 0.0
        %417 = vmatprep.mubr.f32.mxu0 0.0
        %418 = vmatmul.mubr.f32.gmra.mrb[0].mxu0 %v348
        %v419 = vpop.f32.mrb[0].mxu0
        %v420 = vadd.f32 0.0, %v419
        %v421 = vpop.f32.mrb[0].mxu0
        %422 = vmatprep.mubr.f32.mxu0 0.0
        %423 = vmatmul.mubr.f32.gmra.mrb[0].mxu0 %v351
        %v424 = vpop.f32.mrb[0].mxu0
        %v425 = vadd.f32 0.0, %v424
        %v426 = vpop.f32.mrb[0].mxu0
        %427 = vdwg.mxu0
        %428 = vmatprep.subr.mxu0 0.0
        %429 = vmatpush1.msra.mxu0 %v319
        %430 = vmatprep.subr.mxu0 0.0
        %431 = vmatpush1.msra.mxu0 %v324
        %432 = vmatprep.subr.mxu0 0.0
        %433 = vmatpush1.msra.mxu0 0.0
        %434 = vmatprep.subr.mxu0 0.0
        %435 = vmatpush1.msra.mxu0 0.0
        %436 = vmatprep.subr.mxu0 0.0
        %437 = vmatpush1.msra.mxu0 0.0
        %438 = vmatprep.subr.mxu0 0.0
        %439 = vmatpush1.msra.mxu0 0.0
        %440 = vmatprep.subr.mxu0 0.0
        %441 = vmatpush1.msra.mxu0 0.0
        %442 = vmatprep.subr.mxu0 0.0
        %443 = vmatpush1.msra.mxu0 0.0
        %444 = vmatprep.subr.mxu0 0.0
        %445 = vmatpush1.msra.mxu0 0.0
        %446 = vmatprep.subr.mxu0 0.0
        %447 = vmatpush1.msra.mxu0 0.0
        %448 = vmatprep.subr.mxu0 0.0
        %449 = vmatpush1.msra.mxu0 0.0
        %450 = vmatprep.subr.mxu0 0.0
        %451 = vmatpush1.msra.mxu0 0.0
        %452 = vmatprep.subr.mxu0 0.0
        %453 = vmatpush1.msra.mxu0 0.0
        %454 = vmatprep.subr.mxu0 0.0
        %455 = vmatpush1.msra.mxu0 0.0
        %456 = vmatprep.subr.mxu0 0.0
        %457 = vmatpush1.msra.mxu0 0.0
        %458 = vmatprep.subr.mxu0 0.0
        %459 = vmatpush1.msra.mxu0 0.0
        %460 = vmatprep.subr.mxu0 0.0
        %461 = vmatpush1.msra.mxu0 0.0
        %462 = vmatprep.subr.mxu0 0.0
        %463 = vmatpush1.msra.mxu0 0.0
        %464 = vmatprep.subr.mxu0 0.0
        %465 = vmatpush1.msra.mxu0 0.0
        %466 = vmatprep.subr.mxu0 0.0
        %467 = vmatpush1.msra.mxu0 0.0
        %468 = vmatprep.subr.mxu0 0.0
        %469 = vmatpush1.msra.mxu0 0.0
        %470 = vmatprep.subr.mxu0 0.0
        %471 = vmatpush1.msra.mxu0 0.0
        %472 = vmatprep.subr.mxu0 0.0
        %473 = vmatpush1.msra.mxu0 0.0
        %474 = vmatprep.subr.mxu0 0.0
        %475 = vmatpush1.msra.mxu0 0.0
        %476 = vmatprep.subr.mxu0 0.0
        %477 = vmatpush1.msra.mxu0 0.0
        %478 = vmatprep.subr.mxu0 0.0
        %479 = vmatpush1.msra.mxu0 0.0
        %480 = vmatprep.subr.mxu0 0.0
        %481 = vmatpush1.msra.mxu0 0.0
        %482 = vmatprep.subr.mxu0 0.0
        %483 = vmatpush1.msra.mxu0 0.0
        %484 = vmatprep.subr.mxu0 0.0
        %485 = vmatpush1.msra.mxu0 0.0
        %486 = vmatprep.subr.mxu0 0.0
        %487 = vmatpush1.msra.mxu0 0.0
        %488 = vmatprep.subr.mxu0 0.0
        %489 = vmatpush1.msra.mxu0 0.0
        %490 = vmatprep.subr.mxu0 0.0
        %491 = vmatpush1.msra.mxu0 0.0
        %492 = vmatprep.mubr.f32.mxu0 0.0
        %493 = vmatmul.mubr.f32.gmra.mrb[0].mxu0 %v348
        %v494 = vpop.f32.mrb[0].mxu0
        %v495 = vadd.f32 0.0, %v494
        %v496 = vpop.f32.mrb[0].mxu0
        %497 = vmatprep.mubr.f32.mxu0 0.0
        %498 = vmatmul.mubr.f32.gmra.mrb[0].mxu0 %v351
        %v499 = vpop.f32.mrb[0].mxu0
        %v500 = vadd.f32 0.0, %v499
        %v501 = vpop.f32.mrb[0].mxu0
        %502 = vdwg.mxu0
        %503 = vmatprep.subr.mxu0 0.0
        %504 = vmatpush1.msra.mxu0 %v329
        %505 = vmatprep.subr.mxu0 0.0
        %506 = vmatpush1.msra.mxu0 %v334
        %507 = vmatprep.subr.mxu0 0.0
        %508 = vmatpush1.msra.mxu0 0.0
        %509 = vmatprep.subr.mxu0 0.0
        %510 = vmatpush1.msra.mxu0 0.0
        %511 = vmatprep.subr.mxu0 0.0
        %512 = vmatpush1.msra.mxu0 0.0
        %513 = vmatprep.subr.mxu0 0.0
        %514 = vmatpush1.msra.mxu0 0.0
        %515 = vmatprep.subr.mxu0 0.0
        %516 = vmatpush1.msra.mxu0 0.0
        %517 = vmatprep.subr.mxu0 0.0
        %518 = vmatpush1.msra.mxu0 0.0
        %519 = vmatprep.subr.mxu0 0.0
        %520 = vmatpush1.msra.mxu0 0.0
        %521 = vmatprep.subr.mxu0 0.0
        %522 = vmatpush1.msra.mxu0 0.0
        %523 = vmatprep.subr.mxu0 0.0
        %524 = vmatpush1.msra.mxu0 0.0
        %525 = vmatprep.subr.mxu0 0.0
        %526 = vmatpush1.msra.mxu0 0.0
        %527 = vmatprep.subr.mxu0 0.0
        %528 = vmatpush1.msra.mxu0 0.0
        %529 = vmatprep.subr.mxu0 0.0
        %530 = vmatpush1.msra.mxu0 0.0
        %531 = vmatprep.subr.mxu0 0.0
        %532 = vmatpush1.msra.mxu0 0.0
        %533 = vmatprep.subr.mxu0 0.0
        %534 = vmatpush1.msra.mxu0 0.0
        %535 = vmatprep.subr.mxu0 0.0
        %536 = vmatpush1.msra.mxu0 0.0
        %537 = vmatprep.subr.mxu0 0.0
        %538 = vmatpush1.msra.mxu0 0.0
        %539 = vmatprep.subr.mxu0 0.0
        %540 = vmatpush1.msra.mxu0 0.0
        %541 = vmatprep.subr.mxu0 0.0
        %542 = vmatpush1.msra.mxu0 0.0
        %543 = vmatprep.subr.mxu0 0.0
        %544 = vmatpush1.msra.mxu0 0.0
        %545 = vmatprep.subr.mxu0 0.0
        %546 = vmatpush1.msra.mxu0 0.0
        %547 = vmatprep.subr.mxu0 0.0
        %548 = vmatpush1.msra.mxu0 0.0
        %549 = vmatprep.subr.mxu0 0.0
        %550 = vmatpush1.msra.mxu0 0.0
        %551 = vmatprep.subr.mxu0 0.0
        %552 = vmatpush1.msra.mxu0 0.0
        %553 = vmatprep.subr.mxu0 0.0
        %554 = vmatpush1.msra.mxu0 0.0
        %555 = vmatprep.subr.mxu0 0.0
        %556 = vmatpush1.msra.mxu0 0.0
        %557 = vmatprep.subr.mxu0 0.0
        %558 = vmatpush1.msra.mxu0 0.0
        %559 = vmatprep.subr.mxu0 0.0
        %560 = vmatpush1.msra.mxu0 0.0
        %561 = vmatprep.subr.mxu0 0.0
        %562 = vmatpush1.msra.mxu0 0.0
        %563 = vmatprep.subr.mxu0 0.0
        %564 = vmatpush1.msra.mxu0 0.0
        %565 = vmatprep.subr.mxu0 0.0
        %566 = vmatpush1.msra.mxu0 0.0
        %567 = vmatprep.mubr.f32.mxu0 0.0
        %568 = vmatmul.mubr.f32.gmra.mrb[0].mxu0 %v348
        %v569 = vpop.f32.mrb[0].mxu0
        %v570 = vadd.f32 0.0, %v569
        %v571 = vpop.f32.mrb[0].mxu0
        %572 = vmatprep.mubr.f32.mxu0 0.0
        %573 = vmatmul.mubr.f32.gmra.mrb[0].mxu0 %v351
        %v574 = vpop.f32.mrb[0].mxu0
        %v575 = vadd.f32 0.0, %v574
        %v576 = vpop.f32.mrb[0].mxu0
        %577 = vdwg.mxu0
        %578 = vmatprep.subr.mxu0 0.0
        %579 = vmatpush1.msra.mxu0 %v339
        %580 = vmatprep.subr.mxu0 0.0
        %581 = vmatpush1.msra.mxu0 %v344
        %582 = vmatprep.subr.mxu0 0.0
        %583 = vmatpush1.msra.mxu0 0.0
        %584 = vmatprep.subr.mxu0 0.0
        %585 = vmatpush1.msra.mxu0 0.0
        %586 = vmatprep.subr.mxu0 0.0
        %587 = vmatpush1.msra.mxu0 0.0
        %588 = vmatprep.subr.mxu0 0.0
        %589 = vmatpush1.msra.mxu0 0.0
        %590 = vmatprep.subr.mxu0 0.0
        %591 = vmatpush1.msra.mxu0 0.0
        %592 = vmatprep.subr.mxu0 0.0
        %593 = vmatpush1.msra.mxu0 0.0
        %594 = vmatprep.subr.mxu0 0.0
        %595 = vmatpush1.msra.mxu0 0.0
        %596 = vmatprep.subr.mxu0 0.0
        %597 = vmatpush1.msra.mxu0 0.0
        %598 = vmatprep.subr.mxu0 0.0
        %599 = vmatpush1.msra.mxu0 0.0
        %600 = vmatprep.subr.mxu0 0.0
        %601 = vmatpush1.msra.mxu0 0.0
        %602 = vmatprep.subr.mxu0 0.0
        %603 = vmatpush1.msra.mxu0 0.0
        %604 = vmatprep.subr.mxu0 0.0
        %605 = vmatpush1.msra.mxu0 0.0
        %606 = vmatprep.subr.mxu0 0.0
        %607 = vmatpush1.msra.mxu0 0.0
        %608 = vmatprep.subr.mxu0 0.0
        %609 = vmatpush1.msra.mxu0 0.0
        %610 = vmatprep.subr.mxu0 0.0
        %611 = vmatpush1.msra.mxu0 0.0
        %612 = vmatprep.subr.mxu0 0.0
        %613 = vmatpush1.msra.mxu0 0.0
        %614 = vmatprep.subr.mxu0 0.0
        %615 = vmatpush1.msra.mxu0 0.0
        %616 = vmatprep.subr.mxu0 0.0
        %617 = vmatpush1.msra.mxu0 0.0
        %618 = vmatprep.subr.mxu0 0.0
        %619 = vmatpush1.msra.mxu0 0.0
        %620 = vmatprep.subr.mxu0 0.0
        %621 = vmatpush1.msra.mxu0 0.0
        %622 = vmatprep.subr.mxu0 0.0
        %623 = vmatpush1.msra.mxu0 0.0
        %624 = vmatprep.subr.mxu0 0.0
        %625 = vmatpush1.msra.mxu0 0.0
        %626 = vmatprep.subr.mxu0 0.0
        %627 = vmatpush1.msra.mxu0 0.0
        %628 = vmatprep.subr.mxu0 0.0
        %629 = vmatpush1.msra.mxu0 0.0
        %630 = vmatprep.subr.mxu0 0.0
        %631 = vmatpush1.msra.mxu0 0.0
        %632 = vmatprep.subr.mxu0 0.0
        %633 = vmatpush1.msra.mxu0 0.0
        %634 = vmatprep.subr.mxu0 0.0
        %635 = vmatpush1.msra.mxu0 0.0
        %636 = vmatprep.subr.mxu0 0.0
        %637 = vmatpush1.msra.mxu0 0.0
        %638 = vmatprep.subr.mxu0 0.0
        %639 = vmatpush1.msra.mxu0 0.0
        %640 = vmatprep.subr.mxu0 0.0
        %641 = vmatpush1.msra.mxu0 0.0
        %642 = vmatprep.mubr.f32.mxu0 0.0
        %643 = vmatmul.mubr.f32.gmra.mrb[0].mxu0 %v348
        %v644 = vpop.f32.mrb[0].mxu0
        %v645 = vadd.f32 0.0, %v644
        %v646 = vpop.f32.mrb[0].mxu0
        %647 = vmatprep.mubr.f32.mxu0 0.0
        %648 = vmatmul.mubr.f32.gmra.mrb[0].mxu0 %v351
        %v649 = vpop.f32.mrb[0].mxu0
        %v650 = vadd.f32 0.0, %v649
        %v651 = vpop.f32.mrb[0].mxu0
        %652 = vdwg.mxu0
        %653 = vst.msk [vmem:[%s175] sm:$0xff] %vm217, %v420
        %654 = vst.msk [vmem:[%s175 + $0x8] sm:$0xff] %vm217, %v425
        %655 = vst.msk [vmem:[%s175 + $0x10] sm:$0xff] %vm217, %v495
        %656 = vst.msk [vmem:[%s175 + $0x18] sm:$0xff] %vm217, %v500
        %657 = vst.msk [vmem:[%s175 + $0x20] sm:$0xff] %vm217, %v570
        %658 = vst.msk [vmem:[%s175 + $0x28] sm:$0xff] %vm217, %v575
        %659 = vst.msk [vmem:[%s175 + $0x30] sm:$0xff] %vm217, %v645
        %660 = vst.msk [vmem:[%s175 + $0x38] sm:$0xff] %vm217, %v650
        %s661 = sand.u32 %s75, 1
        %s662 = scalar_lea.sflag [#allocation4], %s661
        %s663 = sand.u32 %s75, 1
        %s664 = smul.addr %s663, 64
        %s665 = scalar_lea.vmem [#allocation7], %s664
        // Predicated region
        $region37: #{translate_forward.1} parent=27 // pred_check
          %p666 = pneg %p85
        $region38: #{translate_forward.1} parent=27 // pred_check_branch
          %668 = sbr.rel (%p666) target = $region40
        $region39: #{translate_forward.1} parent=27 // pred_region
          %s670 = ssub.s32 1024, 1024
          %671 = vsyncadd %s662, %s670
          %s672 = smul.addr %s20, 8
          %s673 = smul.addr %s672, 128
          %s674 = scalar_lea.hbm %s2, %s673
          %s675 = sshll.u32 %s665, 4
          %s676 = int_to_ptr.vmem [resolvable:$true] %s675
          %681 = dma.vmem_to_hbm [thread:$0]  %s676, 1024, %s674, %s662, 128, 128, 8
        $region40: #{translate_forward.1} parent=27 // pred_fallthru
          _
      $region28: #{translate_forward.1} parent=5 // pred_fallthru
        _
      %p682 = scmp.le.s32.totalorder 2, %s15
      // Predicated region
      $region41: #{translate_forward.1} parent=5 // pred_check
        %p683 = pneg %p682
      $region42: #{translate_forward.1} parent=5 // pred_check_branch
        %685 = sbr.rel (%p683) target = $region44
      $region43: #{translate_forward.1} parent=5 // pred_region
        %s686 = ssub.s32 %s15, 2
        // Predicated region
        $region45: #{translate_forward.1} parent=43 // pred_check
          %p687 = pneg %p91
        $region46: #{translate_forward.1} parent=43 // pred_check_branch
          %689 = sbr.rel (%p687) target = $region48
        $region47: #{translate_forward.1} parent=43 // pred_region
          %s690 = sand.u32 %s76, 1
          %s691 = scalar_lea.sflag [#allocation4], %s690
          %s692 = sand.u32 %s76, 1
          %s693 = smul.addr %s692, 64
          %s694 = scalar_lea.vmem [#allocation7], %s693
          %695 = dma.done %s691, 1024
        $region48: #{translate_forward.1} parent=43 // pred_fallthru
          _
      $region44: #{translate_forward.1} parent=5 // pred_fallthru
        _
    $region6: #{translate_forward.1} parent=1 // loop_footer
      %s19 = sadd.s32 1, %s15
    $region7: #{translate_forward.1} parent=1 // loop_footer_branch
      %14 = sbr.rel target = $region3
    $region8: #{translate_forward.1} parent=1 // loop_exit
      _
    %696 = vsyncpa [#allocation3], 1
    %s697 = scalar_lea.sflag [#allocation3], 1
    %698 = vsyncpa %s697, 1
    %699 = vsyncpa [#allocation4], 1
    %s700 = scalar_lea.sflag [#allocation4], 1
    %701 = vsyncpa %s700, 1
    %702 = vsyncpa [#allocation5], 1
    %s703 = scalar_lea.sflag [#allocation5], 1
    %704 = vsyncpa %s703, 1

</llo_original>
